<compile_context>
chip_gen: v5e
topology: v5e:2x2
jax: 0.10.0
libtpu: 0.0.40
codegen_flags: <defaults>
</compile_context>

<pallas_src>
import jax
import jax.numpy as jnp
from jax.experimental import pallas as pl
from jax.experimental.pallas import tpu as pltpu

_LANE = 128


def _round_up(n, m):
    return ((n + m - 1) // m) * m


def _vmem_budget():
    """~75% of physical VMEM; falls back to a v7x-safe 48 MiB."""
    try:
        cap = int(pltpu.get_tpu_info().vmem_capacity_bytes)
    except Exception:
        cap = 64 * 1024 * 1024
    return int(cap * 3 // 4)


def _num_tensorcores():
    """Best-effort TensorCore-per-device count for megacore sharding."""
    try:
        kind = jax.devices()[0].device_kind.lower()
    except Exception:
        return 1
    return 2 if any(t in kind for t in ("v4", "v5p", "v7")) else 1


def mlp_kernel(x_ref, w1_ref, b1_ref, w2_ref, b2_ref, o_ref, acc_ref):
    """One (batch-tile, hidden-tile) grid step of y = relu(x@w1 + b1) @ w2 + b2."""
    h_idx = pl.program_id(1)

    @pl.when(h_idx == 0)
    def _():
        acc_ref[...] = jnp.zeros_like(acc_ref)

    # First linear (f32 MXU accumulation) + bias + ReLU on this hidden block.
    h = jnp.dot(x_ref[...], w1_ref[...], preferred_element_type=jnp.float32)
    h = jnp.maximum(h + b1_ref[...], 0.0)

    # Second linear: feed the MXU in the weight dtype (no-op for f32, full
    # bf16 MXU rate for bf16 weights); accumulate in f32 across hidden blocks.
    h = h.astype(w2_ref.dtype)
    acc_ref[...] += jnp.dot(h, w2_ref[...], preferred_element_type=jnp.float32)

    @pl.when(h_idx == pl.num_programs(1) - 1)
    def _():
        o_ref[...] = (acc_ref[...] + b2_ref[...]).astype(o_ref.dtype)


def _plan_tiles(B, in_p, hid_p, out_p, x_itemsize, w_itemsize, budget, num_cores):
    """Pick (batch_tile, hidden_tile) against the per-generation VMEM budget."""
    headroom = 2 << 20
    avail = max(budget - headroom, 4 << 20)

    def act_bytes(tb, ht):
        # Double-buffered x and out tiles + f32 accumulator scratch
        # + in-body temporaries (h f32, h cast to weight dtype, f32 y product).
        return tb * (2 * in_p * x_itemsize
                     + 2 * out_p * x_itemsize
                     + 4 * out_p                       # acc scratch
                     + 4 * ht                          # h (f32)
                     + w_itemsize * ht                 # h.astype(w2.dtype)
                     + 4 * out_p)                      # f32 dot product temp

    def weight_bytes(ht, nbuf):
        # w1/b1/w2 blocks (nbuf VMEM copies each) + b2 (always single copy).
        return nbuf * w_itemsize * (in_p * ht + ht + ht * out_p) + w_itemsize * out_p

    # Fast path: both weight matrices fully resident (single buffer each).
    if weight_bytes(hid_p, 1) + act_bytes(8, hid_p) <= avail:
        ht, nbuf = hid_p, 1
    else:
        # Fallback: stream hidden-dim blocks, double buffered so the w1/w2
        # DMAs overlap the matmuls.  Block must divide hid_p exactly so no
        # out-of-bounds weight rows/cols ever feed the accumulation.
        k = hid_p // _LANE
        ht = _LANE
        for d in sorted((d for d in range(1, k + 1) if k % d == 0), reverse=True):
            cand = d * _LANE
            if weight_bytes(cand, 2) + act_bytes(8, cand) <= avail:
                ht = cand
                break
        nbuf = 2
        # TODO(synk): if in_p/out_p alone exceed the budget even at ht=128,
        # the in/out feature dims would need tiling too; not needed here.

    # Largest batch tile that still fits next to the weight blocks.
    per_row = act_bytes(1, ht)
    max_rows = max(8, (avail - weight_bytes(ht, nbuf)) // max(per_row, 1))
    tb = int(min(B, 1024, max_rows))

    # Shard across TensorCores only when the chip has >1 TC and each core
    # gets at least one full 256-row MXU M tile (>= 2 tiles/core when B allows).
    if num_cores >= 2 and tb >= B and B >= num_cores * 256:
        per_core = B // num_cores
        target = per_core // 2 if per_core >= 512 else per_core
        tb = min(tb, max(256, (target // 256) * 256))

    # MXU-friendly M alignment on the batch tile.
    if tb < B:
        if tb >= 256:
            tb = (tb // 256) * 256
        elif tb >= 128:
            tb = (tb // 128) * 128
        else:
            tb = max(8, (tb // 8) * 8)
    else:
        tb = B
    return tb, ht


def pad_mlp_params(w1, b1, w2, b2):
    """Zero-pad MLP parameters to lane-dense (x128) feature dims.

    Call ONCE at init and reuse the returned dict for every forward pass
    (padding per call would re-stream both weight matrices through HBM).
    PyTorch nn.Linear stores weight as [out, in]; pass its transpose here.
    """
    in_dim, hid_dim = w1.shape
    out_dim = w2.shape[1]
    in_p = _round_up(in_dim, _LANE)
    hid_p = _round_up(hid_dim, _LANE)
    out_p = _round_up(out_dim, _LANE)
    return dict(
        w1=jnp.pad(w1, ((0, in_p - in_dim), (0, hid_p - hid_dim))),
        b1=jnp.pad(b1, ((0, hid_p - hid_dim),)).reshape(1, hid_p),
        w2=jnp.pad(w2, ((0, hid_p - hid_dim), (0, out_p - out_dim))),
        b2=jnp.pad(b2, ((0, out_p - out_dim),)).reshape(1, out_p),
        in_dim=in_dim,
        out_dim=out_dim,
    )


def simple_mlp(x, params, *, tb=None):
    """Fused MLP forward: relu(x @ w1 + b1) @ w2 + b2.

    x: [B, in_dim]; params: output of pad_mlp_params (padded once at init).
    """
    w1p, b1p, w2p, b2p = params["w1"], params["b1"], params["w2"], params["b2"]
    out_dim = params["out_dim"]
    B = x.shape[0]
    in_p, hid_p = w1p.shape
    out_p = w2p.shape[1]

    # Lane-dense contraction dim: zero x columns * zero w1 rows == exact.
    if x.shape[1] != in_p:
        x = jnp.pad(x, ((0, 0), (0, in_p - x.shape[1])))

    budget = _vmem_budget()
    x_item = jnp.dtype(x.dtype).itemsize
    w_item = jnp.dtype(w1p.dtype).itemsize
    auto_tb, ht = _plan_tiles(B, in_p, hid_p, out_p, x_item, w_item,
                              budget, _num_tensorcores())
    tb = auto_tb if tb is None else min(max(tb, 1), B)

    num_b = pl.cdiv(B, tb)
    num_h = hid_p // ht
    weights_resident = num_h == 1

    def spec(shape, index_map, single_buffer=False):
        # Single-buffer inputs whose index_map is constant across the grid
        # (they are fetched once); leave default double-buffering otherwise.
        if single_buffer:
            return pl.BlockSpec(shape, index_map, pipeline_mode=pl.Buffered(1))
        return pl.BlockSpec(shape, index_map)

    flops = 2 * B * (in_p * hid_p + hid_p * out_p)
    bytes_accessed = (
        B * in_p * x_item
        + num_b * (in_p * hid_p + hid_p * out_p + hid_p) * w_item
        + out_p * w_item
        + B * out_p * x_item
    )

    out_padded = pl.pallas_call(
        mlp_kernel,
        out_shape=jax.ShapeDtypeStruct((B, out_p), x.dtype),
        grid_spec=pltpu.PrefetchScalarGridSpec(
            num_scalar_prefetch=0,
            grid=(num_b, num_h),
            in_specs=[
                spec((tb, in_p), lambda i, h: (i, 0)),                         # x
                spec((in_p, ht), lambda i, h: (0, h), weights_resident),       # w1
                spec((1, ht), lambda i, h: (0, h), weights_resident),          # b1
                spec((ht, out_p), lambda i, h: (h, 0), weights_resident),      # w2
                spec((1, out_p), lambda i, h: (0, 0), True),                   # b2
            ],
            out_specs=pl.BlockSpec((tb, out_p), lambda i, h: (i, 0)),
            scratch_shapes=[pltpu.VMEM((tb, out_p), jnp.float32)],
        ),
        compiler_params=pltpu.CompilerParams(
            dimension_semantics=("parallel", "arbitrary"),
            vmem_limit_bytes=int(budget),
        ),
        cost_estimate=pl.CostEstimate(
            flops=flops, transcendentals=0, bytes_accessed=bytes_accessed),
    )(x, w1p, b1p, w2p, b2p)

    return out_padded[:, :out_dim]


def simple_mlp_ref(x, w1, b1, w2, b2):
    h = jnp.maximum(x @ w1 + b1, 0.0)
    return h @ w2 + b2


if __name__ == "__main__":
    B, in_dim, hid_dim, out_dim = 8, 32, 64, 16

    key = jax.random.PRNGKey(0)
    kx, k1, k2, k3, k4 = jax.random.split(key, 5)

    x = jax.random.normal(kx, (B, in_dim), dtype=jnp.float32)
    # Deterministic parameter init (Kaiming-uniform-ish scale, like nn.Linear).
    w1 = jax.random.uniform(k1, (in_dim, hid_dim), jnp.float32,
                            minval=-1.0, maxval=1.0) / jnp.sqrt(in_dim)
    b1 = jax.random.uniform(k2, (hid_dim,), jnp.float32,
                            minval=-1.0, maxval=1.0) / jnp.sqrt(in_dim)
    w2 = jax.random.uniform(k3, (hid_dim, out_dim), jnp.float32,
                            minval=-1.0, maxval=1.0) / jnp.sqrt(hid_dim)
    b2 = jax.random.uniform(k4, (out_dim,), jnp.float32,
                            minval=-1.0, maxval=1.0) / jnp.sqrt(hid_dim)

    # Pad parameters once at init (hoisted out of the per-call path).
    params = pad_mlp_params(w1, b1, w2, b2)

    out = simple_mlp(x, params)
    out = jax.block_until_ready(out)

    ref = simple_mlp_ref(x, w1, b1, w2, b2)
    assert out.shape == (B, out_dim)
    assert jnp.allclose(out, ref, atol=1e-5, rtol=1e-5)

    print("KERNEL_OK")
</pallas_src>

<mosaic_0001>
module attributes {stable_mosaic.version = 11 : i64} {
  func.func @mlp_kernel(%arg0: i32, %arg1: i32, %arg2: memref<8x128xf32, #tpu.memory_space<vmem>>, %arg3: memref<128x128xf32, #tpu.memory_space<vmem>>, %arg4: memref<1x128xf32, #tpu.memory_space<vmem>>, %arg5: memref<128x128xf32, #tpu.memory_space<vmem>>, %arg6: memref<1x128xf32, #tpu.memory_space<vmem>>, %arg7: memref<8x128xf32, #tpu.memory_space<vmem>>, %arg8: memref<8x128xf32, #tpu.memory_space<vmem>>) attributes {dimension_semantics = [#tpu.dimension_semantics<parallel>, #tpu.dimension_semantics<arbitrary>], iteration_bounds = array<i64: 1, 1>, scalar_prefetch = 0 : i64, scratch_operands = 1 : i64, tpu.core_type = #tpu.core_type<tc>, window_params = [{transform_indices = @transform_0, window_bounds = array<i64: 8, 128>}, {pipeline_mode = #tpu.pipeline_mode<synchronous>, transform_indices = @transform_1, window_bounds = array<i64: 128, 128>}, {pipeline_mode = #tpu.pipeline_mode<synchronous>, transform_indices = @transform_2, window_bounds = array<i64: 1, 128>}, {pipeline_mode = #tpu.pipeline_mode<synchronous>, transform_indices = @transform_3, window_bounds = array<i64: 128, 128>}, {pipeline_mode = #tpu.pipeline_mode<synchronous>, transform_indices = @transform_4, window_bounds = array<i64: 1, 128>}, {transform_indices = @transform_5, window_bounds = array<i64: 8, 128>}]} {
    %c0_i32 = arith.constant 0 : i32
    %0 = arith.cmpi eq, %arg1, %c0_i32 : i32
    %1 = arith.extui %0 : i1 to i32
    %c0_i32_0 = arith.constant 0 : i32
    %2 = arith.cmpi ne, %1, %c0_i32_0 : i32
    scf.if %2 {
      %cst_16 = arith.constant 0.000000e+00 : f32
      %19 = vector.broadcast %cst_16 : f32 to vector<8x128xf32>
      %c0_17 = arith.constant 0 : index
      %c0_18 = arith.constant 0 : index
      %20 = vector.load %arg8[%c0_17, %c0_18] : memref<8x128xf32, #tpu.memory_space<vmem>>, vector<8x128xf32>
      tpu.vector_store %arg8[%c0_17, %c0_18], %19 {strides = array<i32>} : memref<8x128xf32, #tpu.memory_space<vmem>>, vector<8x128xf32>,
    } else {
    }
    %c0 = arith.constant 0 : index
    %c0_1 = arith.constant 0 : index
    %3 = vector.load %arg2[%c0, %c0_1] : memref<8x128xf32, #tpu.memory_space<vmem>>, vector<8x128xf32>
    %c0_2 = arith.constant 0 : index
    %c0_3 = arith.constant 0 : index
    %4 = vector.load %arg3[%c0_2, %c0_3] : memref<128x128xf32, #tpu.memory_space<vmem>>, vector<128x128xf32>
    %cst = arith.constant dense<0.000000e+00> : vector<8x128xf32>
    %5 = tpu.matmul %3, %4, %cst {dimension_numbers = #tpu.dot_dimension_numbers<[1], [0], [0], [1], [0, 0, 1, 1], [], []>} : vector<8x128xf32>, vector<128x128xf32>, vector<8x128xf32> -> vector<8x128xf32>
    %c0_4 = arith.constant 0 : index
    %c0_5 = arith.constant 0 : index
    %6 = vector.load %arg4[%c0_4, %c0_5] : memref<1x128xf32, #tpu.memory_space<vmem>>, vector<1x128xf32>
    %7 = vector.broadcast %6 : vector<1x128xf32> to vector<8x128xf32>
    %8 = arith.addf %5, %7 : vector<8x128xf32>
    %cst_6 = arith.constant 0.000000e+00 : f32
    %9 = vector.broadcast %cst_6 : f32 to vector<8x128xf32>
    %10 = arith.maximumf %8, %9 : vector<8x128xf32>
    %c0_7 = arith.constant 0 : index
    %c0_8 = arith.constant 0 : index
    %11 = vector.load %arg8[%c0_7, %c0_8] : memref<8x128xf32, #tpu.memory_space<vmem>>, vector<8x128xf32>
    %c0_9 = arith.constant 0 : index
    %c0_10 = arith.constant 0 : index
    %12 = vector.load %arg5[%c0_9, %c0_10] : memref<128x128xf32, #tpu.memory_space<vmem>>, vector<128x128xf32>
    %cst_11 = arith.constant dense<0.000000e+00> : vector<8x128xf32>
    %13 = tpu.matmul %10, %12, %cst_11 {dimension_numbers = #tpu.dot_dimension_numbers<[1], [0], [0], [1], [0, 0, 1, 1], [], []>} : vector<8x128xf32>, vector<128x128xf32>, vector<8x128xf32> -> vector<8x128xf32>
    %14 = arith.addf %11, %13 : vector<8x128xf32>
    %c0_12 = arith.constant 0 : index
    %c0_13 = arith.constant 0 : index
    %15 = vector.load %arg8[%c0_12, %c0_13] : memref<8x128xf32, #tpu.memory_space<vmem>>, vector<8x128xf32>
    tpu.vector_store %arg8[%c0_12, %c0_13], %14 {strides = array<i32>} : memref<8x128xf32, #tpu.memory_space<vmem>>, vector<8x128xf32>,
    %c0_i32_14 = arith.constant 0 : i32
    %16 = arith.cmpi eq, %arg1, %c0_i32_14 : i32
    %17 = arith.extui %16 : i1 to i32
    %c0_i32_15 = arith.constant 0 : i32
    %18 = arith.cmpi ne, %17, %c0_i32_15 : i32
    scf.if %18 {
      %c0_16 = arith.constant 0 : index
      %c0_17 = arith.constant 0 : index
      %19 = vector.load %arg8[%c0_16, %c0_17] : memref<8x128xf32, #tpu.memory_space<vmem>>, vector<8x128xf32>
      %c0_18 = arith.constant 0 : index
      %c0_19 = arith.constant 0 : index
      %20 = vector.load %arg6[%c0_18, %c0_19] : memref<1x128xf32, #tpu.memory_space<vmem>>, vector<1x128xf32>
      %21 = vector.broadcast %20 : vector<1x128xf32> to vector<8x128xf32>
      %22 = arith.addf %19, %21 : vector<8x128xf32>
      %c0_20 = arith.constant 0 : index
      %c0_21 = arith.constant 0 : index
      %23 = vector.load %arg7[%c0_20, %c0_21] : memref<8x128xf32, #tpu.memory_space<vmem>>, vector<8x128xf32>
      tpu.vector_store %arg7[%c0_20, %c0_21], %22 {strides = array<i32>} : memref<8x128xf32, #tpu.memory_space<vmem>>, vector<8x128xf32>,
    } else {
    }
    return
  }
  func.func @transform_0(%arg0: i32, %arg1: i32) -> (i32, i32) {
    %c0_i32 = arith.constant 0 : i32
    %c0_i32_0 = arith.constant 0 : i32
    return %arg0, %c0_i32 : i32, i32
  }
  func.func @transform_1(%arg0: i32, %arg1: i32) -> (i32, i32) {
    %c0_i32 = arith.constant 0 : i32
    %c0_i32_0 = arith.constant 0 : i32
    return %c0_i32, %arg1 : i32, i32
  }
  func.func @transform_2(%arg0: i32, %arg1: i32) -> (i32, i32) {
    %c0_i32 = arith.constant 0 : i32
    %c0_i32_0 = arith.constant 0 : i32
    return %c0_i32, %arg1 : i32, i32
  }
  func.func @transform_3(%arg0: i32, %arg1: i32) -> (i32, i32) {
    %c0_i32 = arith.constant 0 : i32
    %c0_i32_0 = arith.constant 0 : i32
    return %arg1, %c0_i32 : i32, i32
  }
  func.func @transform_4(%arg0: i32, %arg1: i32) -> (i32, i32) {
    %c0_i32 = arith.constant 0 : i32
    %c0_i32_0 = arith.constant 0 : i32
    %c0_i32_1 = arith.constant 0 : i32
    return %c0_i32, %c0_i32_0 : i32, i32
  }
  func.func @transform_5(%arg0: i32, %arg1: i32) -> (i32, i32) {
    %c0_i32 = arith.constant 0 : i32
    %c0_i32_0 = arith.constant 0 : i32
    return %arg0, %c0_i32 : i32, i32
  }
}

</mosaic_0001>

<llo_original>
// kernel: tpu_custom_call.1
$region0: #{tpu_custom_call.1}
  #allocation0 [shape = 'u32[]', space=smem, size = 0x4, offset = 0x4, fixed_abs, tag = 'smem constant byte address 0x4 - core index']
  #allocation1 [shape = 'u32[72,128]{1,0:T(1,128)}', space=vmem, size = 0x9000, scoped, tag = 'internal scratch']
  #allocation2 [shape = 'f32[8,128]{1,0:T(8,128)}', space=vmem, size = 0x1000, scoped, tag = 'scratch operand']
  %s0 = inlined_call_operand.hbm [shape: f32[8,128], index: 0, kind: input, shape index: {}]
  %s1 = inlined_call_operand.hbm [shape: f32[128,128], index: 1, kind: input, shape index: {}]
  %s2 = inlined_call_operand.vmem [shape: f32[1,128], index: 2, kind: input, shape index: {}]
  %s3 = inlined_call_operand.hbm [shape: f32[128,128], index: 3, kind: input, shape index: {}]
  %s4 = inlined_call_operand.vmem [shape: f32[1,128], index: 4, kind: input, shape index: {}]
  %s5 = inlined_call_operand.hbm [shape: f32[8,128], index: 5, kind: output, shape index: {}]
  %s6 = sld [smem:[#allocation0]]
  $region50: #{tpu_custom_call.1} parent=0
    _
  %s8 = ssub.s32 1, %s6
  %s9 = scalar_select 0, %s8, %s6
  $region1: #{tpu_custom_call.1} parent=0
    #allocation3 [shape = 'u8[4096]{0}', space=vmem, size = 0x1000, scoped, tag = 'input window, operand 0, single buffered']
    #allocation4 [shape = 's32[1]{0}', space=sflag, size = 0x4, scoped, tag = 'scoped memory for tpu_custom_call.1']
    #allocation5 [shape = 's32[1]{0}', space=sflag, size = 0x4, scoped, tag = 'scoped memory for tpu_custom_call.1']
    #allocation6 [shape = 'u8[65536]{0}', space=vmem, size = 0x10000, scoped, tag = 'input window, operand 1, single buffered']
    #allocation7 [shape = 's32[1]{0}', space=sflag, size = 0x4, scoped, tag = 'scoped memory for tpu_custom_call.1']
    #allocation8 [shape = 'u8[65536]{0}', space=vmem, size = 0x10000, scoped, tag = 'input window, operand 3, single buffered']
    #allocation9 [shape = 'u8[4096]{0}', space=vmem, size = 0x1000, scoped, tag = 'output window, operand 0, single buffered']
    %10 = vsyncpa [#allocation4], 0
    %11 = vsyncpa [#allocation7], 0
    %12 = vsyncpa [#allocation5], 0
    // Predicated region
    $region2: #{tpu_custom_call.1} parent=1 // pred_check
      _
    $region3: #{tpu_custom_call.1} parent=1 // pred_check_branch
      %14 = sbr.rel (0) target = $region5
    $region4: #{tpu_custom_call.1} parent=1 // pred_region
      %16 = vsyncadd [#allocation4], 0
      %s18 = sshll.u32 %s0, 4
      %s19 = int_to_ptr.hbm [resolvable:$true] %s18
      %s20 = sshll.u32 [#allocation3], 4
      %s21 = int_to_ptr.vmem [resolvable:$true] %s20
      %23 = dma.hbm_to_vmem [thread:$0]  %s19, 128, %s21, [#allocation4]
    $region5: #{tpu_custom_call.1} parent=1 // pred_fallthru
      _
    // Predicated region
    $region6: #{tpu_custom_call.1} parent=1 // pred_check
      _
    $region7: #{tpu_custom_call.1} parent=1 // pred_check_branch
      %25 = sbr.rel (0) target = $region9
    $region8: #{tpu_custom_call.1} parent=1 // pred_region
      %27 = vsyncadd [#allocation7], 0
      %s28 = sshll.u32 %s1, 4
      %s29 = int_to_ptr.hbm [resolvable:$true] %s28
      %s30 = sshll.u32 [#allocation6], 4
      %s31 = int_to_ptr.vmem [resolvable:$true] %s30
      %36 = dma.hbm_to_vmem [thread:$0]  %s29, 2048, %s31, [#allocation7], 128, 128, 8
    $region9: #{tpu_custom_call.1} parent=1 // pred_fallthru
      _
    // Predicated region
    $region10: #{tpu_custom_call.1} parent=1 // pred_check
      _
    $region11: #{tpu_custom_call.1} parent=1 // pred_check_branch
      %38 = sbr.rel (0) target = $region13
    $region12: #{tpu_custom_call.1} parent=1 // pred_region
      _
    $region13: #{tpu_custom_call.1} parent=1 // pred_fallthru
      _
    // Predicated region
    $region14: #{tpu_custom_call.1} parent=1 // pred_check
      _
    $region15: #{tpu_custom_call.1} parent=1 // pred_check_branch
      %40 = sbr.rel (0) target = $region17
    $region16: #{tpu_custom_call.1} parent=1 // pred_region
      %42 = vsyncadd [#allocation7], 0
      %s43 = sshll.u32 %s3, 4
      %s44 = int_to_ptr.hbm [resolvable:$true] %s43
      %s45 = sshll.u32 [#allocation8], 4
      %s46 = int_to_ptr.vmem [resolvable:$true] %s45
      %51 = dma.hbm_to_vmem [thread:$0]  %s44, 2048, %s46, [#allocation7], 128, 128, 8
    $region17: #{tpu_custom_call.1} parent=1 // pred_fallthru
      _
    // Predicated region
    $region18: #{tpu_custom_call.1} parent=1 // pred_check
      _
    $region19: #{tpu_custom_call.1} parent=1 // pred_check_branch
      %53 = sbr.rel (0) target = $region21
    $region20: #{tpu_custom_call.1} parent=1 // pred_region
      _
    $region21: #{tpu_custom_call.1} parent=1 // pred_fallthru
      _
    // Predicated region
    $region22: #{tpu_custom_call.1} parent=1 // pred_check
      _
    $region23: #{tpu_custom_call.1} parent=1 // pred_check_branch
      %55 = sbr.rel (0) target = $region25
    $region24: #{tpu_custom_call.1} parent=1 // pred_region
      %57 = dma.done [#allocation4], 128
    $region25: #{tpu_custom_call.1} parent=1 // pred_fallthru
      _
    // Predicated region
    $region26: #{tpu_custom_call.1} parent=1 // pred_check
      _
    $region27: #{tpu_custom_call.1} parent=1 // pred_check_branch
      %59 = sbr.rel (0) target = $region29
    $region28: #{tpu_custom_call.1} parent=1 // pred_region
      %61 = dma.done [#allocation7], 2048
    $region29: #{tpu_custom_call.1} parent=1 // pred_fallthru
      _
    // Predicated region
    $region30: #{tpu_custom_call.1} parent=1 // pred_check
      _
    $region31: #{tpu_custom_call.1} parent=1 // pred_check_branch
      %63 = sbr.rel (0) target = $region33
    $region32: #{tpu_custom_call.1} parent=1 // pred_region
      %65 = dma.done [#allocation7], 2048
    $region33: #{tpu_custom_call.1} parent=1 // pred_fallthru
      _
    %p66 = scmp.eq.s32.totalorder 0, 0
    // Predicated region
    $region34: #{tpu_custom_call.1} parent=1 // pred_check
      %p67 = pneg %p66
    $region35: #{tpu_custom_call.1} parent=1 // pred_check_branch
      %69 = sbr.rel (%p67) target = $region37
    $region36: #{tpu_custom_call.1} parent=1 // pred_region
      %70 = vst [vmem:[#allocation2] sm:$0xff] 0.0
    $region37: #{tpu_custom_call.1} parent=1 // pred_fallthru
      _
    %v71 = vld [vmem:[#allocation3] sm:$0xff]
    %v72 = vld [vmem:[#allocation6] sm:$0xff]
    %v73 = vld [vmem:[#allocation6 + $0x8] sm:$0xff]
    %v74 = vld [vmem:[#allocation6 + $0x10] sm:$0xff]
    %v75 = vld [vmem:[#allocation6 + $0x18] sm:$0xff]
    %v76 = vld [vmem:[#allocation6 + $0x20] sm:$0xff]
    %v77 = vld [vmem:[#allocation6 + $0x28] sm:$0xff]
    %v78 = vld [vmem:[#allocation6 + $0x30] sm:$0xff]
    %v79 = vld [vmem:[#allocation6 + $0x38] sm:$0xff]
    %v80 = vld [vmem:[#allocation6 + $0x40] sm:$0xff]
    %v81 = vld [vmem:[#allocation6 + $0x48] sm:$0xff]
    %v82 = vld [vmem:[#allocation6 + $0x50] sm:$0xff]
    %v83 = vld [vmem:[#allocation6 + $0x58] sm:$0xff]
    %v84 = vld [vmem:[#allocation6 + $0x60] sm:$0xff]
    %v85 = vld [vmem:[#allocation6 + $0x68] sm:$0xff]
    %v86 = vld [vmem:[#allocation6 + $0x70] sm:$0xff]
    %v87 = vld [vmem:[#allocation6 + $0x78] sm:$0xff]
    %v88 = vld [vmem:[%s2] sm:$0x1]
    %v90 = vperm.slane %v88, 0
    %92 = vmatpush.msra.mxu0 %v87
    %93 = vmatpush.msra.mxu0 %v86
    %94 = vmatpush.msra.mxu0 %v85
    %95 = vmatpush.msra.mxu0 %v84
    %96 = vmatpush.msra.mxu0 %v83
    %97 = vmatpush.msra.mxu0 %v82
    %98 = vmatpush.msra.mxu0 %v81
    %99 = vmatpush.msra.mxu0 %v80
    %100 = vmatpush.msra.mxu0 %v79
    %101 = vmatpush.msra.mxu0 %v78
    %102 = vmatpush.msra.mxu0 %v77
    %103 = vmatpush.msra.mxu0 %v76
    %104 = vmatpush.msra.mxu0 %v75
    %105 = vmatpush.msra.mxu0 %v74
    %106 = vmatpush.msra.mxu0 %v73
    %107 = vmatpush.msra.mxu0 %v72
    %108 = vmatmul.f32.gmra.mxu0 %v71
    %v109 = vpop.f32.mrf.mxu0
    %v110 = vadd.f32 %v90, %v109
    %111 = vdwg.mxu0
    %v112 = vmax.f32 %v110, 0.0
    %v113 = vld [vmem:[#allocation2] sm:$0xff]
    %v114 = vld [vmem:[#allocation8] sm:$0xff]
    %v115 = vld [vmem:[#allocation8 + $0x8] sm:$0xff]
    %v116 = vld [vmem:[#allocation8 + $0x10] sm:$0xff]
    %v117 = vld [vmem:[#allocation8 + $0x18] sm:$0xff]
    %v118 = vld [vmem:[#allocation8 + $0x20] sm:$0xff]
    %v119 = vld [vmem:[#allocation8 + $0x28] sm:$0xff]
    %v120 = vld [vmem:[#allocation8 + $0x30] sm:$0xff]
    %v121 = vld [vmem:[#allocation8 + $0x38] sm:$0xff]
    %v122 = vld [vmem:[#allocation8 + $0x40] sm:$0xff]
    %v123 = vld [vmem:[#allocation8 + $0x48] sm:$0xff]
    %v124 = vld [vmem:[#allocation8 + $0x50] sm:$0xff]
    %v125 = vld [vmem:[#allocation8 + $0x58] sm:$0xff]
    %v126 = vld [vmem:[#allocation8 + $0x60] sm:$0xff]
    %v127 = vld [vmem:[#allocation8 + $0x68] sm:$0xff]
    %v128 = vld [vmem:[#allocation8 + $0x70] sm:$0xff]
    %v129 = vld [vmem:[#allocation8 + $0x78] sm:$0xff]
    %130 = vmatpush.msra.mxu0 %v129
    %131 = vmatpush.msra.mxu0 %v128
    %132 = vmatpush.msra.mxu0 %v127
    %133 = vmatpush.msra.mxu0 %v126
    %134 = vmatpush.msra.mxu0 %v125
    %135 = vmatpush.msra.mxu0 %v124
    %136 = vmatpush.msra.mxu0 %v123
    %137 = vmatpush.msra.mxu0 %v122
    %138 = vmatpush.msra.mxu0 %v121
    %139 = vmatpush.msra.mxu0 %v120
    %140 = vmatpush.msra.mxu0 %v119
    %141 = vmatpush.msra.mxu0 %v118
    %142 = vmatpush.msra.mxu0 %v117
    %143 = vmatpush.msra.mxu0 %v116
    %144 = vmatpush.msra.mxu0 %v115
    %145 = vmatpush.msra.mxu0 %v114
    %146 = vmatmul.f32.gmra.mxu0 %v112
    %v147 = vpop.f32.mrf.mxu0
    %v148 = vadd.f32 0.0, %v147
    %149 = vdwg.mxu0
    %v150 = vadd.f32 %v113, %v148
    %151 = vst [vmem:[#allocation2] sm:$0xff] %v150
    // Predicated region
    $region38: #{tpu_custom_call.1} parent=1 // pred_check
      %p152 = pneg %p66
    $region39: #{tpu_custom_call.1} parent=1 // pred_check_branch
      %154 = sbr.rel (%p152) target = $region41
    $region40: #{tpu_custom_call.1} parent=1 // pred_region
      %v155 = vld [vmem:[#allocation2] sm:$0xff]
      %v156 = vld [vmem:[%s4] sm:$0x1]
      %v158 = vperm.slane %v156, 0
      %v160 = vadd.f32 %v155, %v158
      %161 = vst [vmem:[#allocation9] sm:$0xff] %v160
    $region41: #{tpu_custom_call.1} parent=1 // pred_fallthru
      _
    // Predicated region
    $region42: #{tpu_custom_call.1} parent=1 // pred_check
      _
    $region43: #{tpu_custom_call.1} parent=1 // pred_check_branch
      %163 = sbr.rel (0) target = $region45
    $region44: #{tpu_custom_call.1} parent=1 // pred_region
      %165 = vsyncadd [#allocation5], 0
      %s167 = sshll.u32 [#allocation9], 4
      %s168 = int_to_ptr.vmem [resolvable:$true] %s167
      %s169 = sshll.u32 %s5, 4
      %s170 = int_to_ptr.hbm [resolvable:$true] %s169
      %172 = dma.vmem_to_hbm [thread:$0]  %s168, 128, %s170, [#allocation5]
    $region45: #{tpu_custom_call.1} parent=1 // pred_fallthru
      _
    // Predicated region
    $region46: #{tpu_custom_call.1} parent=1 // pred_check
      _
    $region47: #{tpu_custom_call.1} parent=1 // pred_check_branch
      %174 = sbr.rel (0) target = $region49
    $region48: #{tpu_custom_call.1} parent=1 // pred_region
      %176 = dma.done [#allocation5], 128
    $region49: #{tpu_custom_call.1} parent=1 // pred_fallthru
      _
    %177 = vsyncpa [#allocation4], 1
    %178 = vsyncpa [#allocation7], 1
    %179 = vsyncpa [#allocation5], 1

</llo_original>
